<compile_context>
chip_gen: v7x
topology: tpu7x:2x2x1
jax: 0.10.0
libtpu: 0.0.40
codegen_flags: <defaults>
</compile_context>

<pallas_src>
import jax
import jax.numpy as jnp
from jax.experimental import pallas as pl
from jax.experimental.pallas import tpu as pltpu

_TARGET_TILE_BYTES = 4 * 1024 * 1024     # ~4 MiB/block (review: 4-8 MiB ok on all gens)
_VMEM_LIMIT_BYTES = 48 * 1024 * 1024     # 2x(in+out) 4 MiB blocks ~= 16 MiB; headroom, <64 MiB v7x physical
_FAST_PATH_MAX_BYTES = 1 * 1024 * 1024   # below this, XLA's native slice is strictly cheaper
_MIN_PACK_BYTES = 16 * 1024              # don't pack bn>1 if per-image DMA segments would be tiny
_MIN_GRID_STEPS = 8                      # keep enough steps for pipelining / megacore sharding
_MAX_INFLIGHT_DMAS = 4                   # concurrent HBM->HBM copies in the DMA path


def _sublane_multiple(dtype) -> int:
    bits = jnp.dtype(dtype).itemsize * 8
    return {32: 8, 16: 16, 8: 32}.get(bits, 8)


def _choose_cols(hw: int, sub: int):
    """Largest lane-dense cols (multiple of 128) dividing hw with rows >= sublane multiple."""
    divisors = [c for c in (2048, 1024, 512, 256, 128) if hw % c == 0]
    if not divisors:
        return None
    for c in divisors:                 # prefer wide cols only if sublanes stay full
        if hw // c >= sub:
            return c
    return divisors[-1]                # else maximize rows (avoid 1-sublane tiles)


# ----------------------------------------------------------------------------
# Staged (BlockSpec-pipelined) copy kernel: pure rank-matched vld/vst copy.
# ----------------------------------------------------------------------------
def _select_channel_kernel(x_ref, o_ref):
    # x_ref: (bn, tr, cols) block of the statically-selected channel
    # (channel dim squeezed away by the BlockSpec).
    o_ref[...] = x_ref[...]


# ----------------------------------------------------------------------------
# HBM->HBM DMA copy kernel (no VMEM staging at all).
# ----------------------------------------------------------------------------
def _dma_select_kernel_factory(idx: int, groups):
    def kernel(x_hbm, o_hbm, sems):
        copies = []
        for i, (b0, bs) in enumerate(groups):
            cp = pltpu.make_async_copy(
                x_hbm.at[pl.ds(b0, bs), pl.ds(idx, 1), :, :],
                o_hbm.at[pl.ds(b0, bs), :, :, :],
                sems.at[i],
            )
            cp.start()
            copies.append(cp)
        for cp in copies:
            cp.wait()
    return kernel


def color_seperation(image: jax.Array, channel: str, *, force_pallas: bool = False) -> jax.Array:
    """Extract a single channel from an RGB image batch.

    Args:
      image: (N, 3, H, W) array (NCHW layout).
      channel: one of 'R', 'G', 'B' (static).
      force_pallas: skip the small-input XLA-slice fast path (for testing).

    Returns:
      (N, 1, H, W) array of the same dtype containing only the chosen channel.
    """
    assert image.ndim == 4 and image.shape[1] == 3, "expected NCHW RGB input"
    assert channel in "RGB", channel
    idx = "RGB".index(channel)  # static python int
    n, _, h, w = image.shape
    hw = h * w
    itemsize = jnp.dtype(image.dtype).itemsize
    sub = _sublane_multiple(image.dtype)

    # ---- fast path: a standalone copy can't beat XLA's strided slice at tiny sizes.
    if not force_pallas and n * hw * itemsize < _FAST_PATH_MAX_BYTES:
        return image[:, idx:idx + 1, :, :]

    cols = _choose_cols(hw, sub)

    # ---- fallback: H*W not 128-divisible -> pure HBM->HBM DMA copy.
    if cols is None:
        num_groups = min(n, _MAX_INFLIGHT_DMAS)
        base, rem = divmod(n, num_groups)
        groups, b0 = [], 0
        for g in range(num_groups):
            bs = base + (1 if g < rem else 0)
            groups.append((b0, bs))
            b0 += bs
        return pl.pallas_call(
            _dma_select_kernel_factory(idx, groups),
            out_shape=jax.ShapeDtypeStruct((n, 1, h, w), image.dtype),
            in_specs=[pl.BlockSpec(memory_space=pl.ANY)],
            out_specs=pl.BlockSpec(memory_space=pl.ANY),
            scratch_shapes=[pltpu.SemaphoreType.DMA((num_groups,))],
        )(image)

    # ---- lane-dense staged path -------------------------------------------
    rows = hw // cols
    x = image.reshape(n, 3, rows, cols)  # contiguous reshape, no data movement

    # block sizing (~_TARGET_TILE_BYTES per block)
    row_bytes = cols * itemsize
    max_rows = max(sub, (_TARGET_TILE_BYTES // row_bytes) // sub * sub)
    if rows <= max_rows:
        tr = rows  # whole per-channel image (spatially) in one block
        bn = 1
        img_bytes = rows * cols * itemsize
        if img_bytes >= _MIN_PACK_BYTES:  # only pack if DMA segments stay big enough
            cap = min(
                n,
                max(1, _TARGET_TILE_BYTES // img_bytes),
                max(1, n // _MIN_GRID_STEPS),  # keep >= ~8 grid steps
            )
            for cand in range(cap, 0, -1):
                if n % cand == 0:
                    bn = cand
                    break
    else:
        tr = max_rows  # multiple of the dtype sublane tile
        bn = 1

    grid = (n // bn, pl.cdiv(rows, tr))

    out = pl.pallas_call(
        _select_channel_kernel,
        out_shape=jax.ShapeDtypeStruct((n, rows, cols), image.dtype),
        grid=grid,
        in_specs=[
            # batch tile b, statically-selected channel `idx` (squeezed), row
            # tile r, full lane-dense column extent.
            # TODO(synk): on v7x sweep pipeline_mode=pl.Buffered(3) if the
            # profile shows the input DMA exposed behind output writeback.
            pl.BlockSpec((bn, pl.Squeezed(), tr, cols),
                         lambda b, r, idx=idx: (b, idx, r, 0)),
        ],
        out_specs=pl.BlockSpec((bn, tr, cols), lambda b, r: (b, r, 0)),
        compiler_params=pltpu.CompilerParams(
            # Pure copy: every grid step is independent (helps v7x's 2 TCs).
            dimension_semantics=("parallel", "parallel"),
            # Headroom for double-buffered multi-MiB tiles (v5e default scoped
            # VMEM is only 16 MiB); still under v7x's 64 MiB physical VMEM.
            vmem_limit_bytes=_VMEM_LIMIT_BYTES,
        ),
    )(x)

    return out.reshape(n, 1, h, w)


if __name__ == "__main__":
    key = jax.random.PRNGKey(0)
    k1, k2, k3 = jax.random.split(key, 3)

    # 1) Staged BlockSpec path (H*W = 256 is a multiple of 128), forced Pallas.
    x = jax.random.uniform(k1, (2, 3, 16, 16), dtype=jnp.float32) * 255.0
    out = jax.block_until_ready(color_seperation(x, "G", force_pallas=True))
    assert out.shape == (2, 1, 16, 16), out.shape
    assert jnp.array_equal(out, x[:, 1:2, :, :]), "channel selection mismatch (G, staged)"

    # 2) HBM->HBM DMA path (H*W = 400 is NOT a multiple of 128), forced Pallas.
    y = jax.random.uniform(k2, (2, 3, 20, 20), dtype=jnp.float32) * 255.0
    out2 = jax.block_until_ready(color_seperation(y, "B", force_pallas=True))
    assert out2.shape == (2, 1, 20, 20), out2.shape
    assert jnp.array_equal(out2, y[:, 2:3, :, :]), "channel selection mismatch (B, DMA)"

    # 3) Auto fast path (tiny input -> plain XLA strided slice, no pallas_call).
    z = jax.random.uniform(k3, (2, 3, 16, 16), dtype=jnp.float32) * 255.0
    out3 = jax.block_until_ready(color_seperation(z, "R"))
    assert out3.shape == (2, 1, 16, 16), out3.shape
    assert jnp.array_equal(out3, z[:, 0:1, :, :]), "channel selection mismatch (R, fast path)"

    print("KERNEL_OK")
</pallas_src>

<mosaic_0001>
module attributes {stable_mosaic.version = 11 : i64} {
  func.func @_select_channel_kernel(%arg0: i32, %arg1: i32, %arg2: memref<1x1x2x128xf32, #tpu.memory_space<vmem>>, %arg3: memref<1x2x128xf32, #tpu.memory_space<vmem>>) attributes {dimension_semantics = [#tpu.dimension_semantics<parallel>, #tpu.dimension_semantics<parallel>], iteration_bounds = array<i64: 2, 1>, scalar_prefetch = 0 : i64, scratch_operands = 0 : i64, tpu.core_type = #tpu.core_type<tc>, window_params = [{transform_indices = @transform_0, window_bounds = array<i64: 1, 1, 2, 128>}, {transform_indices = @transform_1, window_bounds = array<i64: 1, 2, 128>}]} {
    %c0 = arith.constant 0 : index
    %c0_0 = arith.constant 0 : index
    %c0_1 = arith.constant 0 : index
    %c0_2 = arith.constant 0 : index
    %0 = vector.load %arg2[%c0, %c0_0, %c0_1, %c0_2] : memref<1x1x2x128xf32, #tpu.memory_space<vmem>>, vector<1x1x2x128xf32>
    %1 = vector.shape_cast %0 : vector<1x1x2x128xf32> to vector<1x2x128xf32>
    %c0_3 = arith.constant 0 : index
    %c0_4 = arith.constant 0 : index
    %c0_5 = arith.constant 0 : index
    %2 = vector.load %arg3[%c0_3, %c0_4, %c0_5] : memref<1x2x128xf32, #tpu.memory_space<vmem>>, vector<1x2x128xf32>
    tpu.vector_store %arg3[%c0_3, %c0_4, %c0_5], %1 {strides = array<i32>} : memref<1x2x128xf32, #tpu.memory_space<vmem>>, vector<1x2x128xf32>,
    return
  }
  func.func @transform_0(%arg0: i32, %arg1: i32) -> (i32, i32, i32, i32) {
    %c1_i32 = arith.constant 1 : i32
    %c0_i32 = arith.constant 0 : i32
    %c0_i32_0 = arith.constant 0 : i32
    return %arg0, %c1_i32, %arg1, %c0_i32 : i32, i32, i32, i32
  }
  func.func @transform_1(%arg0: i32, %arg1: i32) -> (i32, i32, i32) {
    %c0_i32 = arith.constant 0 : i32
    %c0_i32_0 = arith.constant 0 : i32
    return %arg0, %arg1, %c0_i32 : i32, i32, i32
  }
}

</mosaic_0001>

<llo_original>
// kernel: tpu_custom_call.1
$region0: #{tpu_custom_call.1}
  #allocation0 [shape = 'u32[]', space=smem, size = 0x4, offset = 0x4, fixed_abs, tag = 'smem constant byte address 0x4 - core index']
  #allocation1 [shape = 'u32[144,128]{1,0:T(1,128)}', space=vmem, size = 0x12000, scoped, tag = 'internal scratch']
  %s0 = inlined_call_operand.hbm [shape: f32[2,3,2,128], index: 0, kind: input, shape index: {}]
  %s1 = inlined_call_operand.hbm [shape: f32[2,2,128], index: 1, kind: output, shape index: {}]
  %s2 = sld [smem:[#allocation0]]
  $region41: #{tpu_custom_call.1} parent=0
    _
  %s4 = ssub.s32 1, %s2
  %s5 = scalar_select 0, %s4, %s2
  $region1: #{tpu_custom_call.1} parent=0
    #allocation2 [shape = 'u8[2048]{0}', space=vmem, size = 0x800, scoped, tag = 'input window, operand 0']
    #allocation3 [shape = 's32[2]{0}', space=sflag, size = 0x8, scoped, tag = 'scoped memory for tpu_custom_call.1']
    #allocation4 [shape = 's32[2]{0}', space=sflag, size = 0x8, scoped, tag = 'scoped memory for tpu_custom_call.1']
    #allocation5 [shape = 'u8[2048]{0}', space=vmem, size = 0x800, scoped, tag = 'output window, operand 0']
    %6 = vsyncpa [#allocation3], 0
    %s7 = scalar_lea.sflag [#allocation3], 1
    %8 = vsyncpa %s7, 0
    %9 = vsyncpa [#allocation4], 0
    %s10 = scalar_lea.sflag [#allocation4], 1
    %11 = vsyncpa %s10, 0
    loop: start=0, step=1, limit=4
    $region2: #{tpu_custom_call.1} parent=1 // loop_pre_header
      _
    $region3: #{tpu_custom_call.1} parent=1 // loop_header
      %s13 = sphi 0, %s17
      %p14 = scmp.ge.s32.totalorder %s13, 4
      %s20 = sphi 0, %s32
      %s21 = sphi 0, %s28
      %s22 = sphi 0, %s20
      %s23 = sphi 0, %s21
      %s24 = sphi 0, %s22
      %s25 = sphi 0, %s23
      %s37 = sphi 0, %s39
      %s40 = sphi 0, %s37
      %s41 = sphi 0, %s40
      %s57 = sphi 0, %s41
      %s65 = sphi 0, %s67
      %s68 = sphi 0, %s65
      %s69 = sphi 0, %s68
      %s85 = sphi 0, %s69
    $region4: #{tpu_custom_call.1} parent=1 // loop_header_branch
      %16 = sbr.rel (%p14) target = $region8
    $region5: #{tpu_custom_call.1} parent=1 // loop_body
      %s18 = ssub.s32 %s13, 1
      %s19 = ssub.s32 %s13, 2
      %s26 = sadd.s32 1, %s21
      %p27 = scmp.ge.s32.totalorder %s26, 1
      %s28 = scalar_select %p27, 0, %s26
      %s29 = sadd.s32 1, %s20
      %s30 = scalar_select %p27, %s29, %s20
      %p31 = scmp.ge.s32.totalorder %s30, 2
      %s32 = scalar_select %p31, 0, %s30
      %s33 = ssub.s32 %s20, %s32
      %s34 = ssub.s32 %s21, %s28
      %s35 = sor.u32 %s33, %s34
      %p36 = scmp.eq.s32.totalorder %s35, 0
      %s38 = sadd.s32 %s37, 1
      %s39 = scalar_select %p36, %s37, %s38
      %p42 = pneg %p36
      %p43 = scmp.eq.s32.totalorder %s13, 1
      %p44 = por %p42, %p43
      %p45 = scmp.ne.s32.totalorder %s37, %s40
      %p46 = scmp.eq.s32.totalorder %s13, 0
      %p47 = por %p45, %p46
      %p48 = scmp.ne.s32.totalorder %s37, %s40
      %p49 = scmp.eq.s32.totalorder %s18, 1
      %p50 = por %p48, %p49
      %p51 = scmp.ne.s32.totalorder %s40, %s41
      %p52 = scmp.eq.s32.totalorder %s18, 0
      %p53 = por %p51, %p52
      %p54 = scmp.ne.s32.totalorder %s40, %s41
      %p55 = scmp.eq.s32.totalorder %s19, 1
      %p56 = por %p54, %p55
      %p58 = scmp.ne.s32.totalorder %s41, %s57
      %p59 = scmp.eq.s32.totalorder %s19, 0
      %p60 = por %p58, %p59
      %s61 = ssub.s32 %s20, %s32
      %s62 = ssub.s32 %s21, %s28
      %s63 = sor.u32 %s61, %s62
      %p64 = scmp.eq.s32.totalorder %s63, 0
      %s66 = sadd.s32 %s65, 1
      %s67 = scalar_select %p64, %s65, %s66
      %p70 = pneg %p64
      %p71 = scmp.eq.s32.totalorder %s13, 1
      %p72 = por %p70, %p71
      %p73 = scmp.ne.s32.totalorder %s65, %s68
      %p74 = scmp.eq.s32.totalorder %s13, 0
      %p75 = por %p73, %p74
      %p76 = scmp.ne.s32.totalorder %s65, %s68
      %p77 = scmp.eq.s32.totalorder %s18, 1
      %p78 = por %p76, %p77
      %p79 = scmp.ne.s32.totalorder %s68, %s69
      %p80 = scmp.eq.s32.totalorder %s18, 0
      %p81 = por %p79, %p80
      %p82 = scmp.ne.s32.totalorder %s68, %s69
      %p83 = scmp.eq.s32.totalorder %s19, 1
      %p84 = por %p82, %p83
      %p86 = scmp.ne.s32.totalorder %s69, %s85
      %p87 = scmp.eq.s32.totalorder %s19, 0
      %p88 = por %p86, %p87
      %p89 = scmp.le.s32.totalorder 1, %s13
      %p90 = scmp.lt.s32.totalorder %s13, 3
      %p91 = pnand %p89, %p90
      %p92 = pneg %p91
      // Predicated region
      $region9: #{tpu_custom_call.1} parent=5 // pred_check
        _
      $region10: #{tpu_custom_call.1} parent=5 // pred_check_branch
        %94 = sbr.rel (%p91) target = $region12
      $region11: #{tpu_custom_call.1} parent=5 // pred_region
        %s95 = ssub.s32 %s13, 1
      $region12: #{tpu_custom_call.1} parent=5 // pred_fallthru
        _
      %p96 = scmp.lt.s32.totalorder %s13, 2
      // Predicated region
      $region13: #{tpu_custom_call.1} parent=5 // pred_check
        %p97 = pneg %p96
      $region14: #{tpu_custom_call.1} parent=5 // pred_check_branch
        %99 = sbr.rel (%p97) target = $region16
      $region15: #{tpu_custom_call.1} parent=5 // pred_region
        // Predicated region
        $region17: #{tpu_custom_call.1} parent=15 // pred_check
          %p100 = pneg %p47
        $region18: #{tpu_custom_call.1} parent=15 // pred_check_branch
          %102 = sbr.rel (%p100) target = $region20
        $region19: #{tpu_custom_call.1} parent=15 // pred_region
          %s103 = sand.u32 %s37, 1
          %s104 = scalar_lea.sflag [#allocation3], %s103
          %s105 = sand.u32 %s37, 1
          %s106 = smul.addr %s105, 2
          %s107 = scalar_lea.vmem [#allocation2], %s106
          %s109 = ssub.s32 32, 32
          %110 = vsyncadd %s104, %s109
          %s111 = sadd.s32 %s21, 1
          %s112 = smul.addr %s20, 3
          %s113 = sadd.s32 %s111, %s112
          %s114 = smul.addr %s113, 32
          %s115 = scalar_lea.hbm %s0, %s114
          %s117 = sshll.u32 %s107, 4
          %s118 = int_to_ptr.vmem [resolvable:$true] %s117
          %120 = dma.hbm_to_vmem [thread:$0]  %s115, 32, %s118, %s104
        $region20: #{tpu_custom_call.1} parent=15 // pred_fallthru
          _
      $region16: #{tpu_custom_call.1} parent=5 // pred_fallthru
        _
      %p121 = scmp.le.s32.totalorder 1, %s13
      %p122 = scmp.lt.s32.totalorder %s13, 3
      %p123 = pnand %p121, %p122
      %p124 = pneg %p123
      // Predicated region
      $region21: #{tpu_custom_call.1} parent=5 // pred_check
        _
      $region22: #{tpu_custom_call.1} parent=5 // pred_check_branch
        %126 = sbr.rel (%p123) target = $region24
      $region23: #{tpu_custom_call.1} parent=5 // pred_region
        %s127 = ssub.s32 %s13, 1
        %s128 = sand.u32 %s40, 1
        %s129 = scalar_lea.sflag [#allocation3], %s128
        %s130 = sand.u32 %s40, 1
        %s131 = smul.addr %s130, 2
        %s132 = scalar_lea.vmem [#allocation2], %s131
        // Predicated region
        $region25: #{tpu_custom_call.1} parent=23 // pred_check
          %p133 = pneg %p53
        $region26: #{tpu_custom_call.1} parent=23 // pred_check_branch
          %135 = sbr.rel (%p133) target = $region28
        $region27: #{tpu_custom_call.1} parent=23 // pred_region
          %136 = dma.done %s129, 32
        $region28: #{tpu_custom_call.1} parent=23 // pred_fallthru
          _
        %s137 = sand.u32 %s40, 1
        %s138 = scalar_lea.sflag [#allocation3], %s137
        %s139 = sand.u32 %s40, 1
        %s140 = smul.addr %s139, 2
        %s141 = scalar_lea.vmem [#allocation2], %s140
        %p142 = pneg %p53
        %p143 = pneg %p50
        %p144 = pneg %p81
        %p145 = pneg %p78
        %s146 = sand.u32 %s68, 1
        %s147 = scalar_lea.sflag [#allocation4], %s146
        %s148 = sand.u32 %s68, 1
        %s149 = smul.addr %s148, 2
        %s150 = scalar_lea.vmem [#allocation5], %s149
        %v151 = vld [vmem:[%s132] sm:$0x3]
        %152 = vst [vmem:[%s150] sm:$0x3] %v151
        %s153 = sand.u32 %s68, 1
        %s154 = scalar_lea.sflag [#allocation4], %s153
        %s155 = sand.u32 %s68, 1
        %s156 = smul.addr %s155, 2
        %s157 = scalar_lea.vmem [#allocation5], %s156
        // Predicated region
        $region29: #{tpu_custom_call.1} parent=23 // pred_check
          %p158 = pneg %p78
        $region30: #{tpu_custom_call.1} parent=23 // pred_check_branch
          %160 = sbr.rel (%p158) target = $region32
        $region31: #{tpu_custom_call.1} parent=23 // pred_region
          %s162 = ssub.s32 32, 32
          %163 = vsyncadd %s154, %s162
          %s164 = sadd.s32 %s23, %s22
          %s165 = smul.addr %s164, 32
          %s166 = scalar_lea.hbm %s1, %s165
          %s168 = sshll.u32 %s157, 4
          %s169 = int_to_ptr.vmem [resolvable:$true] %s168
          %171 = dma.vmem_to_hbm [thread:$0]  %s169, 32, %s166, %s154
        $region32: #{tpu_custom_call.1} parent=23 // pred_fallthru
          _
      $region24: #{tpu_custom_call.1} parent=5 // pred_fallthru
        _
      %p172 = scmp.le.s32.totalorder 2, %s13
      // Predicated region
      $region33: #{tpu_custom_call.1} parent=5 // pred_check
        %p173 = pneg %p172
      $region34: #{tpu_custom_call.1} parent=5 // pred_check_branch
        %175 = sbr.rel (%p173) target = $region36
      $region35: #{tpu_custom_call.1} parent=5 // pred_region
        %s176 = ssub.s32 %s13, 2
        // Predicated region
        $region37: #{tpu_custom_call.1} parent=35 // pred_check
          %p177 = pneg %p84
        $region38: #{tpu_custom_call.1} parent=35 // pred_check_branch
          %179 = sbr.rel (%p177) target = $region40
        $region39: #{tpu_custom_call.1} parent=35 // pred_region
          %s180 = sand.u32 %s69, 1
          %s181 = scalar_lea.sflag [#allocation4], %s180
          %s182 = sand.u32 %s69, 1
          %s183 = smul.addr %s182, 2
          %s184 = scalar_lea.vmem [#allocation5], %s183
          %185 = dma.done %s181, 32
        $region40: #{tpu_custom_call.1} parent=35 // pred_fallthru
          _
      $region36: #{tpu_custom_call.1} parent=5 // pred_fallthru
        _
    $region6: #{tpu_custom_call.1} parent=1 // loop_footer
      %s17 = sadd.s32 1, %s13
    $region7: #{tpu_custom_call.1} parent=1 // loop_footer_branch
      %12 = sbr.rel target = $region3
    $region8: #{tpu_custom_call.1} parent=1 // loop_exit
      _
    %186 = vsyncpa [#allocation3], 1
    %s187 = scalar_lea.sflag [#allocation3], 1
    %188 = vsyncpa %s187, 1
    %189 = vsyncpa [#allocation4], 1
    %s190 = scalar_lea.sflag [#allocation4], 1
    %191 = vsyncpa %s190, 1

</llo_original>
